<compile_context>
chip_gen: v6e
topology: v6e:2x2x1
jax: 0.10.0
libtpu: 0.0.40
codegen_flags: <defaults>
</compile_context>

<pallas_src>
import functools

import jax
import jax.numpy as jnp
from jax import lax
from jax.experimental import pallas as pl
from jax.experimental.pallas import tpu as pltpu

LANES = 128
SUBLANES = 8


def _custom_loss_kernel(pred_ref, tgt_ref, partial_ref, *,
                        w_lt30, w_ge30, pen_gt100,
                        tile_rows, sub, n_total, needs_mask):
    groups = tile_rows // sub
    block_row0 = pl.program_id(0) * tile_rows

    def body(g, acc):
        r0 = pl.multiple_of(g * sub, sub)
        p = pred_ref[pl.ds(r0, sub), :].astype(jnp.float32)
        t = tgt_ref[pl.ds(r0, sub), :].astype(jnp.float32)
        d = p - t
        loss = jnp.where(t < 30.0, w_lt30, w_ge30) * (d * d)
        over = p - 100.0
        loss = loss + jnp.where(p > 100.0, pen_gt100 * (over * over), 0.0)
        if needs_mask:
            r = lax.broadcasted_iota(jnp.int32, (sub, LANES), 0)
            lane = lax.broadcasted_iota(jnp.int32, (sub, LANES), 1)
            idx = (block_row0 + g * sub + r) * LANES + lane
            loss = jnp.where(idx < n_total, loss, 0.0)
        return acc + loss

    acc = lax.fori_loop(0, groups, body,
                        jnp.zeros((sub, LANES), jnp.float32),
                        unroll=min(8, groups))
    partial_ref[0] = acc


def custom_loss(predictions, targets, *,
                weight_0_30=2, weight_above_30=1, penalty_above_100=1,
                tile_rows=2048):
    assert predictions.shape == targets.shape
    n_total = predictions.size

    # Native dtype, no host upcast (halves DMA bytes for bf16/fp16 inputs).
    p_flat = predictions.reshape(-1)
    t_flat = targets.reshape(-1)

    # Only when the flat length is not a whole number of 128-lane rows do we
    # pad (< 128 elements) so the free reshape below is legal; padded slots
    # are masked out inside the kernel.
    padded = pl.cdiv(n_total, LANES) * LANES
    if padded != n_total:
        p_flat = jnp.pad(p_flat, (0, padded - n_total))
        t_flat = jnp.pad(t_flat, (0, padded - n_total))

    rows = padded // LANES
    p2 = p_flat.reshape(rows, LANES)   # free reshape, no copy
    t2 = t_flat.reshape(rows, LANES)

    if rows >= SUBLANES:
        tr = max(SUBLANES, (min(tile_rows, rows) // SUBLANES) * SUBLANES)
        sub = SUBLANES
    else:
        # Tiny input: single block equal to the full array (divisibility
        # exemption: block == full dims).
        tr = rows
        sub = rows
    num_blocks = pl.cdiv(rows, tr)
    # Mask needed iff the grid covers more elements than the real input
    # (lane padding and/or ragged last block).
    needs_mask = (num_blocks * tr * LANES) != n_total

    kernel = functools.partial(
        _custom_loss_kernel,
        w_lt30=float(weight_0_30),
        w_ge30=float(weight_above_30),
        pen_gt100=float(penalty_above_100),
        tile_rows=tr, sub=sub, n_total=n_total, needs_mask=needs_mask,
    )

    partials = pl.pallas_call(
        kernel,
        out_shape=jax.ShapeDtypeStruct((num_blocks, sub, LANES), jnp.float32),
        grid_spec=pltpu.PrefetchScalarGridSpec(
            num_scalar_prefetch=0,
            grid=(num_blocks,),
            in_specs=[
                pl.BlockSpec((tr, LANES), lambda i: (i, 0)),
                pl.BlockSpec((tr, LANES), lambda i: (i, 0)),
            ],
            out_specs=pl.BlockSpec((1, sub, LANES), lambda i: (i, 0, 0)),
        ),
        compiler_params=pltpu.CompilerParams(
            dimension_semantics=("parallel",)),
    )(p2, t2)

    # Tiny finalize outside the kernel: one cross-lane/sublane reduction and
    # the mean divide.
    return jnp.sum(partials) / jnp.float32(n_total)


def _reference_loss(predictions, targets,
                    weight_0_30=2, weight_above_30=1, penalty_above_100=1):
    p = predictions.astype(jnp.float32)
    t = targets.astype(jnp.float32)
    sq = (p - t) ** 2
    w = jnp.where(t < 30.0, float(weight_0_30), float(weight_above_30))
    loss = w * sq
    loss = loss + jnp.where(p > 100.0,
                            float(penalty_above_100) * (p - 100.0) ** 2, 0.0)
    return jnp.mean(loss)


if __name__ == "__main__":
    key = jax.random.PRNGKey(0)
    k1, k2 = jax.random.split(key)
    # Small regression-style (N, C, H, W) tensor; values span the interesting
    # regimes: target < 30, target >= 30, and pred > 100.
    shape = (2, 4, 16, 16)
    predictions = jax.random.uniform(k1, shape, jnp.float32, 0.0, 130.0)
    targets = jax.random.uniform(k2, shape, jnp.float32, 0.0, 60.0)

    out = jax.block_until_ready(custom_loss(predictions, targets))
    ref = jax.block_until_ready(_reference_loss(predictions, targets))
    assert jnp.allclose(out, ref, rtol=1e-5, atol=1e-3), (out, ref)
    print("KERNEL_OK")
</pallas_src>

<mosaic_0001>
module attributes {stable_mosaic.version = 11 : i64} {
  func.func @_custom_loss_kernel(%arg0: i32, %arg1: memref<16x128xf32, #tpu.memory_space<vmem>>, %arg2: memref<16x128xf32, #tpu.memory_space<vmem>>, %arg3: memref<1x8x128xf32, #tpu.memory_space<vmem>>) attributes {dimension_semantics = [#tpu.dimension_semantics<parallel>], iteration_bounds = array<i64: 1>, scalar_prefetch = 0 : i64, scratch_operands = 0 : i64, tpu.core_type = #tpu.core_type<tc>, window_params = [{transform_indices = @transform_0, window_bounds = array<i64: 16, 128>}, {transform_indices = @transform_1, window_bounds = array<i64: 16, 128>}, {transform_indices = @transform_2, window_bounds = array<i64: 1, 8, 128>}]} {
    %cst = arith.constant 0.000000e+00 : f32
    %0 = vector.broadcast %cst : f32 to vector<8x128xf32>
    %c0_i32 = arith.constant 0 : i32
    %c8_i32 = arith.constant 8 : i32
    %1 = arith.muli %c0_i32, %c8_i32 : i32
    %2 = tpu.assume_multiple %1, 8 : i32
    %3 = arith.index_cast %2 : i32 to index
    %c0 = arith.constant 0 : index
    %4 = vector.load %arg1[%3, %c0] : memref<16x128xf32, #tpu.memory_space<vmem>>, vector<8x128xf32>
    %5 = arith.index_cast %2 : i32 to index
    %c0_0 = arith.constant 0 : index
    %6 = vector.load %arg2[%5, %c0_0] : memref<16x128xf32, #tpu.memory_space<vmem>>, vector<8x128xf32>
    %7 = arith.subf %4, %6 : vector<8x128xf32>
    %cst_1 = arith.constant 3.000000e+01 : f32
    %8 = vector.broadcast %cst_1 : f32 to vector<8x128xf32>
    %9 = arith.cmpf olt, %6, %8 : vector<8x128xf32>
    %cst_2 = arith.constant 2.000000e+00 : f32
    %cst_3 = arith.constant 1.000000e+00 : f32
    %10 = vector.broadcast %cst_2 : f32 to vector<8x128xf32>
    %11 = vector.broadcast %cst_3 : f32 to vector<8x128xf32>
    %12 = arith.select %9, %10, %11 : vector<8x128xi1>, vector<8x128xf32>
    %13 = arith.mulf %7, %7 : vector<8x128xf32>
    %14 = arith.mulf %12, %13 : vector<8x128xf32>
    %cst_4 = arith.constant 1.000000e+02 : f32
    %15 = vector.broadcast %cst_4 : f32 to vector<8x128xf32>
    %16 = arith.subf %4, %15 : vector<8x128xf32>
    %cst_5 = arith.constant 1.000000e+02 : f32
    %17 = vector.broadcast %cst_5 : f32 to vector<8x128xf32>
    %18 = arith.cmpf ogt, %4, %17 : vector<8x128xf32>
    %19 = arith.mulf %16, %16 : vector<8x128xf32>
    %cst_6 = arith.constant 1.000000e+00 : f32
    %20 = vector.broadcast %cst_6 : f32 to vector<8x128xf32>
    %21 = arith.mulf %20, %19 : vector<8x128xf32>
    %cst_7 = arith.constant 0.000000e+00 : f32
    %22 = vector.broadcast %cst_7 : f32 to vector<8x128xf32>
    %23 = arith.select %18, %21, %22 : vector<8x128xi1>, vector<8x128xf32>
    %24 = arith.addf %14, %23 : vector<8x128xf32>
    %25 = arith.addf %0, %24 : vector<8x128xf32>
    %c1_i32 = arith.constant 1 : i32
    %c8_i32_8 = arith.constant 8 : i32
    %26 = arith.muli %c1_i32, %c8_i32_8 : i32
    %27 = tpu.assume_multiple %26, 8 : i32
    %28 = arith.index_cast %27 : i32 to index
    %c0_9 = arith.constant 0 : index
    %29 = vector.load %arg1[%28, %c0_9] : memref<16x128xf32, #tpu.memory_space<vmem>>, vector<8x128xf32>
    %30 = arith.index_cast %27 : i32 to index
    %c0_10 = arith.constant 0 : index
    %31 = vector.load %arg2[%30, %c0_10] : memref<16x128xf32, #tpu.memory_space<vmem>>, vector<8x128xf32>
    %32 = arith.subf %29, %31 : vector<8x128xf32>
    %cst_11 = arith.constant 3.000000e+01 : f32
    %33 = vector.broadcast %cst_11 : f32 to vector<8x128xf32>
    %34 = arith.cmpf olt, %31, %33 : vector<8x128xf32>
    %cst_12 = arith.constant 2.000000e+00 : f32
    %cst_13 = arith.constant 1.000000e+00 : f32
    %35 = vector.broadcast %cst_12 : f32 to vector<8x128xf32>
    %36 = vector.broadcast %cst_13 : f32 to vector<8x128xf32>
    %37 = arith.select %34, %35, %36 : vector<8x128xi1>, vector<8x128xf32>
    %38 = arith.mulf %32, %32 : vector<8x128xf32>
    %39 = arith.mulf %37, %38 : vector<8x128xf32>
    %cst_14 = arith.constant 1.000000e+02 : f32
    %40 = vector.broadcast %cst_14 : f32 to vector<8x128xf32>
    %41 = arith.subf %29, %40 : vector<8x128xf32>
    %cst_15 = arith.constant 1.000000e+02 : f32
    %42 = vector.broadcast %cst_15 : f32 to vector<8x128xf32>
    %43 = arith.cmpf ogt, %29, %42 : vector<8x128xf32>
    %44 = arith.mulf %41, %41 : vector<8x128xf32>
    %cst_16 = arith.constant 1.000000e+00 : f32
    %45 = vector.broadcast %cst_16 : f32 to vector<8x128xf32>
    %46 = arith.mulf %45, %44 : vector<8x128xf32>
    %cst_17 = arith.constant 0.000000e+00 : f32
    %47 = vector.broadcast %cst_17 : f32 to vector<8x128xf32>
    %48 = arith.select %43, %46, %47 : vector<8x128xi1>, vector<8x128xf32>
    %49 = arith.addf %39, %48 : vector<8x128xf32>
    %50 = arith.addf %25, %49 : vector<8x128xf32>
    %c2_i32 = arith.constant 2 : i32
    %c0_18 = arith.constant 0 : index
    %c0_19 = arith.constant 0 : index
    %c0_20 = arith.constant 0 : index
    %51 = vector.load %arg3[%c0_18, %c0_19, %c0_20] : memref<1x8x128xf32, #tpu.memory_space<vmem>>, vector<1x8x128xf32>
    %52 = vector.shape_cast %51 : vector<1x8x128xf32> to vector<8x128xf32>
    %53 = vector.shape_cast %50 : vector<8x128xf32> to vector<1x8x128xf32>
    tpu.vector_store %arg3[%c0_18, %c0_19, %c0_20], %53 {strides = array<i32>} : memref<1x8x128xf32, #tpu.memory_space<vmem>>, vector<1x8x128xf32>,
    return
  }
  func.func @transform_0(%arg0: i32) -> (i32, i32) {
    %c0_i32 = arith.constant 0 : i32
    %c0_i32_0 = arith.constant 0 : i32
    return %arg0, %c0_i32 : i32, i32
  }
  func.func @transform_1(%arg0: i32) -> (i32, i32) {
    %c0_i32 = arith.constant 0 : i32
    %c0_i32_0 = arith.constant 0 : i32
    return %arg0, %c0_i32 : i32, i32
  }
  func.func @transform_2(%arg0: i32) -> (i32, i32, i32) {
    %c0_i32 = arith.constant 0 : i32
    %c0_i32_0 = arith.constant 0 : i32
    %c0_i32_1 = arith.constant 0 : i32
    return %arg0, %c0_i32, %c0_i32_0 : i32, i32, i32
  }
}

</mosaic_0001>

<llo_original>
// kernel: tpu_custom_call.1
$region0: #{tpu_custom_call.1}
  #allocation0 [shape = 'u32[]', space=smem, size = 0x4, offset = 0x4, fixed_abs, tag = 'smem constant byte address 0x4 - core index']
  #allocation1 [shape = 'u32[144,128]{1,0:T(1,128)}', space=vmem, size = 0x12000, scoped, tag = 'internal scratch']
  %s0 = inlined_call_operand.hbm [shape: f32[16,128], index: 0, kind: input, shape index: {}]
  %s1 = inlined_call_operand.hbm [shape: f32[16,128], index: 1, kind: input, shape index: {}]
  %s2 = inlined_call_operand.hbm [shape: f32[1,8,128], index: 2, kind: output, shape index: {}]
  %s3 = sld [smem:[#allocation0]]
  $region26: #{tpu_custom_call.1} parent=0
    _
  %s5 = ssub.s32 1, %s3
  %s6 = scalar_select 0, %s5, %s3
  $region1: #{tpu_custom_call.1} parent=0
    #allocation2 [shape = 'u8[8192]{0}', space=vmem, size = 0x2000, scoped, tag = 'input window, operand 0, single buffered']
    #allocation3 [shape = 's32[1]{0}', space=sflag, size = 0x4, scoped, tag = 'scoped memory for tpu_custom_call.1']
    #allocation4 [shape = 's32[1]{0}', space=sflag, size = 0x4, scoped, tag = 'scoped memory for tpu_custom_call.1']
    #allocation5 [shape = 'u8[8192]{0}', space=vmem, size = 0x2000, scoped, tag = 'input window, operand 1, single buffered']
    #allocation6 [shape = 's32[1]{0}', space=sflag, size = 0x4, scoped, tag = 'scoped memory for tpu_custom_call.1']
    #allocation7 [shape = 'u8[4096]{0}', space=vmem, size = 0x1000, scoped, tag = 'output window, operand 0, single buffered']
    %7 = vsyncpa [#allocation3], 0
    %8 = vsyncpa [#allocation6], 0
    %9 = vsyncpa [#allocation4], 0
    // Predicated region
    $region2: #{tpu_custom_call.1} parent=1 // pred_check
      _
    $region3: #{tpu_custom_call.1} parent=1 // pred_check_branch
      %11 = sbr.rel (0) target = $region5
    $region4: #{tpu_custom_call.1} parent=1 // pred_region
      %s13 = ssub.s32 256, 256
      %14 = vsyncadd [#allocation3], %s13
      %s15 = sshll.u32 [#allocation2], 4
      %s16 = int_to_ptr.vmem [resolvable:$true] %s15
      %21 = dma.hbm_to_vmem [thread:$0]  %s0, 256, %s16, [#allocation3], 128, 128, 8
    $region5: #{tpu_custom_call.1} parent=1 // pred_fallthru
      _
    // Predicated region
    $region6: #{tpu_custom_call.1} parent=1 // pred_check
      _
    $region7: #{tpu_custom_call.1} parent=1 // pred_check_branch
      %23 = sbr.rel (0) target = $region9
    $region8: #{tpu_custom_call.1} parent=1 // pred_region
      %s25 = ssub.s32 256, 256
      %26 = vsyncadd [#allocation6], %s25
      %s27 = sshll.u32 [#allocation5], 4
      %s28 = int_to_ptr.vmem [resolvable:$true] %s27
      %33 = dma.hbm_to_vmem [thread:$0]  %s1, 256, %s28, [#allocation6], 128, 128, 8
    $region9: #{tpu_custom_call.1} parent=1 // pred_fallthru
      _
    // Predicated region
    $region10: #{tpu_custom_call.1} parent=1 // pred_check
      _
    $region11: #{tpu_custom_call.1} parent=1 // pred_check_branch
      %35 = sbr.rel (0) target = $region13
    $region12: #{tpu_custom_call.1} parent=1 // pred_region
      %36 = dma.done [#allocation3], 256
    $region13: #{tpu_custom_call.1} parent=1 // pred_fallthru
      _
    // Predicated region
    $region14: #{tpu_custom_call.1} parent=1 // pred_check
      _
    $region15: #{tpu_custom_call.1} parent=1 // pred_check_branch
      %38 = sbr.rel (0) target = $region17
    $region16: #{tpu_custom_call.1} parent=1 // pred_region
      %39 = dma.done [#allocation6], 256
    $region17: #{tpu_custom_call.1} parent=1 // pred_fallthru
      _
    %v40 = vld [vmem:[#allocation2] sm:$0xff]
    %v41 = vld [vmem:[#allocation5] sm:$0xff]
    %v42 = vsub.f32 %v40, %v41
    %vm43 = vcmp.lt.f32.partialorder %v41, 30.0
    %v44 = vsel %vm43, 2.0, 1.0
    %v45 = vmul.f32 %v42, %v42
    %v46 = vmul.f32 %v44, %v45
    %v47 = vsub.f32 %v40, 100.0
    %vm48 = vcmp.gt.f32.partialorder %v40, 100.0
    %v49 = vmul.f32 %v47, %v47
    %v50 = vsel %vm48, %v49, 0.0
    %v51 = vadd.f32 %v46, %v50
    %v52 = vadd.f32 %v51, 0.0
    %s53 = scalar_lea.vmem [#allocation2], 8
    %v54 = vld [vmem:[%s53] sm:$0xff]
    %s55 = scalar_lea.vmem [#allocation5], 8
    %v56 = vld [vmem:[%s55] sm:$0xff]
    %v57 = vsub.f32 %v54, %v56
    %vm58 = vcmp.lt.f32.partialorder %v56, 30.0
    %v59 = vsel %vm58, 2.0, 1.0
    %v60 = vmul.f32 %v57, %v57
    %v61 = vmul.f32 %v59, %v60
    %v62 = vsub.f32 %v54, 100.0
    %vm63 = vcmp.gt.f32.partialorder %v54, 100.0
    %v64 = vmul.f32 %v62, %v62
    %v65 = vsel %vm63, %v64, 0.0
    %v66 = vadd.f32 %v61, %v65
    %v67 = vadd.f32 %v52, %v66
    %68 = vst [vmem:[#allocation7] sm:$0xff] %v67
    // Predicated region
    $region18: #{tpu_custom_call.1} parent=1 // pred_check
      _
    $region19: #{tpu_custom_call.1} parent=1 // pred_check_branch
      %70 = sbr.rel (0) target = $region21
    $region20: #{tpu_custom_call.1} parent=1 // pred_region
      %s72 = ssub.s32 128, 128
      %73 = vsyncadd [#allocation4], %s72
      %s75 = sshll.u32 [#allocation7], 4
      %s76 = int_to_ptr.vmem [resolvable:$true] %s75
      %78 = dma.vmem_to_hbm [thread:$0]  %s76, 128, %s2, [#allocation4]
    $region21: #{tpu_custom_call.1} parent=1 // pred_fallthru
      _
    // Predicated region
    $region22: #{tpu_custom_call.1} parent=1 // pred_check
      _
    $region23: #{tpu_custom_call.1} parent=1 // pred_check_branch
      %80 = sbr.rel (0) target = $region25
    $region24: #{tpu_custom_call.1} parent=1 // pred_region
      %81 = dma.done [#allocation4], 128
    $region25: #{tpu_custom_call.1} parent=1 // pred_fallthru
      _
    %82 = vsyncpa [#allocation3], 1
    %83 = vsyncpa [#allocation6], 1
    %84 = vsyncpa [#allocation4], 1

</llo_original>
